<compile_context>
chip_gen: v5e
topology: v5e:2x2
jax: 0.10.0
libtpu: 0.0.40
codegen_flags: <defaults>
</compile_context>

<pallas_src>
import functools
import math

import jax
import jax.numpy as jnp
from jax.experimental import pallas as pl
from jax.experimental.pallas import tpu as pltpu

# Widest-first lane-width candidates (all multiples of 128).
_LANE_CANDIDATES = (4096, 2048, 1024, 512, 256, 128)
# Below this, a fused XLA elementwise op beats any pallas_call dispatch.
_SMALL_INPUT_BYPASS_BYTES = 256 * 1024
# Above this, force >= 2 grid steps so v7x's 2 TensorCores both stream.
_MIN_BYTES_FOR_GRID_SPLIT = 2 * 1024 * 1024


def _relu_kernel(x_ref, o_ref):
    # Elementwise ReLU on the current VMEM tile (pure VPU work; HBM-bound).
    o_ref[...] = jnp.maximum(x_ref[...], 0)


@functools.lru_cache(maxsize=1)
def _chip_block_config():
    """Returns (block_bytes, vmem_limit_bytes_or_None) for the local TPU."""
    kind = ""
    try:
        kind = jax.devices()[0].device_kind.lower()
    except Exception:
        pass
    if "v7" in kind:
        # 8 MiB blocks -> 2 bufs x (in + out) ~= 32 MiB of pipeline buffers.
        # Raise the scoped-VMEM limit above the 32 MiB default; 48 MiB stays
        # well under the 64 MiB physical VMEM per TensorCore.
        return 8 * 1024 * 1024, 48 * 1024 * 1024
    if "v6" in kind:
        # ~16 MiB of pipeline buffers: inside the 32 MiB scoped default.
        return 4 * 1024 * 1024, None
    # v5e (16 MiB scoped default) and unknown generations: stay conservative.
    return 2 * 1024 * 1024, None


def _round_down(x, m):
    return (x // m) * m


def _pick_lane_width(total):
    """Widest lane width; prefer exact divisibility with >= 8 full rows."""
    # Pass 1: exact divisor with full-sublane occupancy (rows >= 8).
    for cand in _LANE_CANDIDATES:
        if total % cand == 0 and total // cand >= 8:
            return cand, True
    # Pass 2: widest candidate that still gives >= 8 full rows (ragged tail
    # handled outside the kernel).
    for cand in _LANE_CANDIDATES:
        if total // cand >= 8:
            return cand, total % cand == 0
    # Tiny tensor: fall back to 128 lanes (rows < 8 can't be avoided).
    return 128, total % 128 == 0


def _relu_2d(x2d, rows, lane_w, itemsize, donate_input):
    """Run the streaming ReLU kernel over a (rows, lane_w) lane-dense slab."""
    block_bytes, vmem_limit = _chip_block_config()

    # Target-sized blocks; row count a multiple of 32 sublanes (safe for any
    # dtype packing), capped at the full row count (block == full dim legal).
    block_rows = max(32, _round_down(block_bytes // (lane_w * itemsize), 32))
    block_rows = min(block_rows, rows)

    # Guarantee >= 2 grid steps on non-trivial slabs so the "parallel" axis
    # actually shards across v7x's two TensorCores (2x HBM bandwidth).
    slab_bytes = rows * lane_w * itemsize
    if slab_bytes > _MIN_BYTES_FOR_GRID_SPLIT and rows > 8:
        half_rows = _round_down((rows + 1) // 2, 32)
        if half_rows == 0:
            half_rows = max(8, _round_down((rows + 1) // 2, 8))
        block_rows = min(block_rows, half_rows)

    cp_kwargs = dict(dimension_semantics=("parallel",))
    if vmem_limit is not None:
        cp_kwargs["vmem_limit_bytes"] = vmem_limit

    return pl.pallas_call(
        _relu_kernel,
        out_shape=jax.ShapeDtypeStruct((rows, lane_w), x2d.dtype),
        grid=(pl.cdiv(rows, block_rows),),
        in_specs=[pl.BlockSpec((block_rows, lane_w), lambda i: (i, 0))],
        out_specs=pl.BlockSpec((block_rows, lane_w), lambda i: (i, 0)),
        compiler_params=pltpu.CompilerParams(**cp_kwargs),
        input_output_aliases={0: 0} if donate_input else {},
    )(x2d)


def lrp_backward_noop_forward(x, *, force_kernel=False, donate_input=False):
    """Forward of LRPBackwardNoopModule(nn.ReLU()): out = relu(x).

    Accepts any shape / float dtype; values, shape and dtype are preserved.
    `force_kernel=True` skips the small-input XLA bypass (used for testing).
    `donate_input=True` aliases the output onto the input buffer for callers
    whose input is dead after this op.
    """
    orig_shape = x.shape
    total = int(math.prod(orig_shape)) if orig_shape else 1
    itemsize = jnp.dtype(x.dtype).itemsize

    # Tiny tensors: fixed pallas_call dispatch + pipeline prologue dominates;
    # a fused XLA elementwise op is strictly faster.
    if total * itemsize < _SMALL_INPUT_BYPASS_BYTES and not force_kernel:
        return jnp.maximum(x, 0)

    lane_w, exact = _pick_lane_width(total)
    main = total if exact else _round_down(total, lane_w)
    if main == 0:
        # Fewer than 128 elements; not worth (or possible as) a slab kernel.
        return jnp.maximum(x, 0)

    flat = jnp.reshape(x, (total,))
    rows = main // lane_w
    x2d = jnp.reshape(flat if main == total else flat[:main], (rows, lane_w))

    out2d = _relu_2d(x2d, rows, lane_w, itemsize, donate_input)
    out_main = jnp.reshape(out2d, (main,))

    if main != total:
        # Ragged (<lane_w-element) tail: handled by XLA on the slice; no
        # whole-array pad / slice passes over HBM.
        tail = jnp.maximum(flat[main:], 0)
        out_flat = jnp.concatenate([out_main, tail])
    else:
        out_flat = out_main
    return jnp.reshape(out_flat, orig_shape)


if __name__ == "__main__":
    key = jax.random.PRNGKey(0)

    # Primary small NCHW input consistent with conv-style LRP usage.  Force
    # the Pallas path so the kernel itself is exercised despite its size.
    x = jax.random.normal(key, (2, 4, 16, 16), dtype=jnp.float32)
    out = jax.block_until_ready(lrp_backward_noop_forward(x, force_kernel=True))
    ref = jnp.maximum(x, 0.0)
    assert out.shape == x.shape and out.dtype == x.dtype
    assert bool(jnp.allclose(out, ref)), "mismatch vs reference ReLU"

    # Extra sanity shapes:
    #  - ~4 MiB tensor: normal dispatch, multi-step grid (megacore split path)
    #  - non-128-divisible shape: prefix kernel + XLA tail path (forced)
    #  - tiny tensor: small-input XLA bypass path
    checks = (
        ((8, 32, 64, 64), False),
        ((3, 5, 7, 11), True),
        ((1, 4, 8, 8), False),
    )
    for shape, force in checks:
        key, sub = jax.random.split(key)
        xi = jax.random.normal(sub, shape, dtype=jnp.float32)
        oi = jax.block_until_ready(
            lrp_backward_noop_forward(xi, force_kernel=force))
        assert oi.shape == xi.shape and oi.dtype == xi.dtype
        assert bool(jnp.allclose(oi, jnp.maximum(xi, 0.0))), f"mismatch at {shape}"

    print("KERNEL_OK")
</pallas_src>

<mosaic_0001>
module attributes {stable_mosaic.version = 11 : i64} {
  func.func @_relu_kernel(%arg0: i32, %arg1: memref<8x256xf32, #tpu.memory_space<vmem>>, %arg2: memref<8x256xf32, #tpu.memory_space<vmem>>) attributes {dimension_semantics = [#tpu.dimension_semantics<parallel>], iteration_bounds = array<i64: 1>, scalar_prefetch = 0 : i64, scratch_operands = 0 : i64, tpu.core_type = #tpu.core_type<tc>, window_params = [{transform_indices = @transform_0, window_bounds = array<i64: 8, 256>}, {transform_indices = @transform_1, window_bounds = array<i64: 8, 256>}]} {
    %c0 = arith.constant 0 : index
    %c0_0 = arith.constant 0 : index
    %0 = vector.load %arg1[%c0, %c0_0] : memref<8x256xf32, #tpu.memory_space<vmem>>, vector<8x256xf32>
    %cst = arith.constant 0.000000e+00 : f32
    %1 = vector.broadcast %cst : f32 to vector<8x256xf32>
    %2 = arith.maximumf %0, %1 : vector<8x256xf32>
    %c0_1 = arith.constant 0 : index
    %c0_2 = arith.constant 0 : index
    %3 = vector.load %arg2[%c0_1, %c0_2] : memref<8x256xf32, #tpu.memory_space<vmem>>, vector<8x256xf32>
    tpu.vector_store %arg2[%c0_1, %c0_2], %2 {strides = array<i32>} : memref<8x256xf32, #tpu.memory_space<vmem>>, vector<8x256xf32>,
    return
  }
  func.func @transform_0(%arg0: i32) -> (i32, i32) {
    %c0_i32 = arith.constant 0 : i32
    %c0_i32_0 = arith.constant 0 : i32
    return %arg0, %c0_i32 : i32, i32
  }
  func.func @transform_1(%arg0: i32) -> (i32, i32) {
    %c0_i32 = arith.constant 0 : i32
    %c0_i32_0 = arith.constant 0 : i32
    return %arg0, %c0_i32 : i32, i32
  }
}

</mosaic_0001>

<llo_original>
// kernel: tpu_custom_call.1
$region0: #{tpu_custom_call.1}
  #allocation0 [shape = 'u32[]', space=smem, size = 0x4, offset = 0x4, fixed_abs, tag = 'smem constant byte address 0x4 - core index']
  #allocation1 [shape = 'u32[72,128]{1,0:T(1,128)}', space=vmem, size = 0x9000, scoped, tag = 'internal scratch']
  %s0 = inlined_call_operand.hbm [shape: f32[8,256], index: 0, kind: input, shape index: {}]
  %s1 = inlined_call_operand.hbm [shape: f32[8,256], index: 1, kind: output, shape index: {}]
  %s2 = sld [smem:[#allocation0]]
  $region18: #{tpu_custom_call.1} parent=0
    _
  %s4 = ssub.s32 1, %s2
  %s5 = scalar_select 0, %s4, %s2
  $region1: #{tpu_custom_call.1} parent=0
    #allocation2 [shape = 'u8[8192]{0}', space=vmem, size = 0x2000, scoped, tag = 'input window, operand 0, single buffered']
    #allocation3 [shape = 's32[1]{0}', space=sflag, size = 0x4, scoped, tag = 'scoped memory for tpu_custom_call.1']
    #allocation4 [shape = 's32[1]{0}', space=sflag, size = 0x4, scoped, tag = 'scoped memory for tpu_custom_call.1']
    #allocation5 [shape = 'u8[8192]{0}', space=vmem, size = 0x2000, scoped, tag = 'output window, operand 0, single buffered']
    %6 = vsyncpa [#allocation3], 0
    %7 = vsyncpa [#allocation4], 0
    // Predicated region
    $region2: #{tpu_custom_call.1} parent=1 // pred_check
      _
    $region3: #{tpu_custom_call.1} parent=1 // pred_check_branch
      %9 = sbr.rel (0) target = $region5
    $region4: #{tpu_custom_call.1} parent=1 // pred_region
      %11 = vsyncadd [#allocation3], 0
      %s13 = sshll.u32 %s0, 4
      %s14 = int_to_ptr.hbm [resolvable:$true] %s13
      %s15 = sshll.u32 [#allocation2], 4
      %s16 = int_to_ptr.vmem [resolvable:$true] %s15
      %18 = dma.hbm_to_vmem [thread:$0]  %s14, 256, %s16, [#allocation3]
    $region5: #{tpu_custom_call.1} parent=1 // pred_fallthru
      _
    // Predicated region
    $region6: #{tpu_custom_call.1} parent=1 // pred_check
      _
    $region7: #{tpu_custom_call.1} parent=1 // pred_check_branch
      %20 = sbr.rel (0) target = $region9
    $region8: #{tpu_custom_call.1} parent=1 // pred_region
      %22 = dma.done [#allocation3], 256
    $region9: #{tpu_custom_call.1} parent=1 // pred_fallthru
      _
    %v23 = vld [vmem:[#allocation2] sm:$0xff]
    %v24 = vld [vmem:[#allocation2 + $0x8] sm:$0xff]
    %v25 = vmax.f32 %v23, 0.0
    %v26 = vmax.f32 %v24, 0.0
    %27 = vst [vmem:[#allocation5] sm:$0xff] %v25
    %28 = vst [vmem:[#allocation5 + $0x8] sm:$0xff] %v26
    // Predicated region
    $region10: #{tpu_custom_call.1} parent=1 // pred_check
      _
    $region11: #{tpu_custom_call.1} parent=1 // pred_check_branch
      %30 = sbr.rel (0) target = $region13
    $region12: #{tpu_custom_call.1} parent=1 // pred_region
      %32 = vsyncadd [#allocation4], 0
      %s34 = sshll.u32 [#allocation5], 4
      %s35 = int_to_ptr.vmem [resolvable:$true] %s34
      %s36 = sshll.u32 %s1, 4
      %s37 = int_to_ptr.hbm [resolvable:$true] %s36
      %39 = dma.vmem_to_hbm [thread:$0]  %s35, 256, %s37, [#allocation4]
    $region13: #{tpu_custom_call.1} parent=1 // pred_fallthru
      _
    // Predicated region
    $region14: #{tpu_custom_call.1} parent=1 // pred_check
      _
    $region15: #{tpu_custom_call.1} parent=1 // pred_check_branch
      %41 = sbr.rel (0) target = $region17
    $region16: #{tpu_custom_call.1} parent=1 // pred_region
      %43 = dma.done [#allocation4], 256
    $region17: #{tpu_custom_call.1} parent=1 // pred_fallthru
      _
    %44 = vsyncpa [#allocation3], 1
    %45 = vsyncpa [#allocation4], 1

</llo_original>
